<compile_context>
chip_gen: v5e
topology: v5e:2x2
jax: 0.10.0
libtpu: 0.0.40
codegen_flags: <defaults>
</compile_context>

<pallas_src>
import jax
import jax.numpy as jnp
from jax.experimental import pallas as pl
from jax.experimental.pallas import tpu as pltpu


# ---------------------------------------------------------------------------
# Pallas kernels: per-sample scale multiply (optionally fused with residual add).
# Kernel args: (scalar-prefetch refs..., input refs..., output refs...).
# ---------------------------------------------------------------------------
def _drop_path_kernel(scale_ref, x_ref, o_ref):
    # scale_ref: (B,) f32 in SMEM; x_ref/o_ref: (1, block_n, C) in the native dtype.
    s = scale_ref[pl.program_id(0)]                      # per-sample keep/keep_prob
    o_ref[...] = (x_ref[...] * s).astype(o_ref.dtype)    # upcast-in-register, store native


def _drop_path_residual_kernel(scale_ref, x_ref, res_ref, o_ref):
    s = scale_ref[pl.program_id(0)]
    o_ref[...] = (res_ref[...] + x_ref[...] * s).astype(o_ref.dtype)


# ---------------------------------------------------------------------------
# Tiling helper: largest divisor of `n` that is <= upper and a multiple of
# `step_multiple` (or the full dim, which is always a legal block size).
# ---------------------------------------------------------------------------
def _largest_divisor(n, upper, step_multiple=1):
    upper = max(1, min(n, upper))
    for cand in range(upper, 0, -1):
        if n % cand == 0 and (cand % step_multiple == 0 or cand == n):
            return cand
    return n


# ---------------------------------------------------------------------------
# Wrapper
# ---------------------------------------------------------------------------
def drop_path_pallas(x, drop_prob, training, key=None, residual=None, *, block_n=None):
    """DropPath forward. x: (B, ...) array; per-sample stochastic depth.

    If `residual` is given (same shape as x), returns residual + drop_path(x),
    fusing the residual add that always follows DropPath in CCT blocks.
    """
    drop_prob = float(drop_prob)
    if drop_prob >= 1.0 or drop_prob < 0.0:
        raise ValueError("drop_prob must be in [0, 1); drop_prob=1 is NaN in the reference.")

    # Identity path: no kernel launch, no cast, no copy.
    if (not training) or drop_prob == 0.0:
        return x if residual is None else x + residual

    if key is None:
        raise ValueError("A PRNG key is required when training with drop_prob > 0.")

    orig_shape = x.shape
    B = x.shape[0]
    C = x.shape[-1] if x.ndim >= 2 else 1
    x3 = x.reshape(B, -1, C)                               # (B, N, C), channel-last
    N = x3.shape[1]
    res3 = None if residual is None else residual.reshape(B, -1, C)

    # Per-sample scale (B,), f32: floor(keep_prob + U) is 1 with prob keep_prob else 0.
    keep_prob = 1.0 - drop_prob
    u = jax.random.uniform(key, (B,), dtype=jnp.float32)
    scale = jnp.floor(keep_prob + u) / keep_prob

    # Tile selection: ~4 MiB of activations per grid step, sublane-aligned for the
    # native dtype ((8,128) f32 / (16,128) bf16 / (32,128) int8 tiles).
    itemsize = jnp.dtype(x.dtype).itemsize
    mult = max(8, 32 // max(1, itemsize))
    if block_n is None:
        target_rows = max(mult, (4 << 20) // max(1, itemsize * C))
        block_n = _largest_divisor(N, target_rows, step_multiple=mult)
        # Guarantee >= 2 grid steps along a "parallel" axis (v7x has 2 TensorCores).
        if B == 1 and N // block_n < 2 and N >= 2:
            block_n = _largest_divisor(N, max(1, N // 2), step_multiple=mult)

    grid = (B, N // block_n)

    # VMEM budget: (inputs + output) double-buffered tiles, plus slack; explicit so big
    # tiles don't trip v5e's 16 MiB default scoped limit and stay inside v7x's 64 MiB.
    tile_bytes = block_n * C * itemsize
    n_streams = 2 if residual is None else 3
    vmem_limit = int(min(64 << 20, max(32 << 20, 2 * n_streams * tile_bytes + (4 << 20))))

    # Index maps receive the scalar-prefetch ref as a trailing positional arg.
    blk = pl.BlockSpec((1, block_n, C), lambda b, t, scale_ref: (b, t, 0))

    if residual is None:
        kernel = _drop_path_kernel
        in_specs = [blk]
        operands = (scale, x3)
    else:
        kernel = _drop_path_residual_kernel
        in_specs = [blk, blk]
        operands = (scale, x3, res3)

    out = pl.pallas_call(
        kernel,
        out_shape=jax.ShapeDtypeStruct((B, N, C), x.dtype),
        grid_spec=pltpu.PrefetchScalarGridSpec(
            num_scalar_prefetch=1,
            grid=grid,
            in_specs=in_specs,
            out_specs=blk,
        ),
        compiler_params=pltpu.CompilerParams(
            dimension_semantics=("parallel", "parallel"),
            vmem_limit_bytes=vmem_limit),
    )(*operands)

    return out.reshape(orig_shape)


# ---------------------------------------------------------------------------
# Pure-JAX references.
# ---------------------------------------------------------------------------
def drop_path_reference(x, drop_prob, training, key=None, residual=None):
    """Mirrors the kernel math exactly (native dtype, f32 scale multiply)."""
    if float(drop_prob) == 0.0 or not training:
        return x if residual is None else x + residual
    keep_prob = 1.0 - float(drop_prob)
    u = jax.random.uniform(key, (x.shape[0],), dtype=jnp.float32)
    scale = (jnp.floor(keep_prob + u) / keep_prob).reshape(
        (x.shape[0],) + (1,) * (x.ndim - 1))
    y = (x * scale).astype(x.dtype)
    return y if residual is None else (residual + x * scale).astype(x.dtype)


def drop_path_torch_like(x, drop_prob, training, key=None):
    """Mirrors the PyTorch reference op order: (x / keep_prob) * mask."""
    if float(drop_prob) == 0.0 or not training:
        return x
    keep_prob = 1.0 - float(drop_prob)
    u = jax.random.uniform(key, (x.shape[0],), dtype=jnp.float32)
    mask = jnp.floor(keep_prob + u).reshape((x.shape[0],) + (1,) * (x.ndim - 1))
    return (x / keep_prob) * mask


# ---------------------------------------------------------------------------
# Main
# ---------------------------------------------------------------------------
if __name__ == "__main__":
    # Token-tensor shapes consistent with CCT usage of DropPath: (B, seq, channels).
    B, N, C = 4, 64, 128
    drop_prob = 0.25

    root = jax.random.PRNGKey(0)
    kx, kr, kd = jax.random.split(root, 3)
    x = jax.random.normal(kx, (B, N, C), jnp.float32)
    res = jax.random.normal(kr, (B, N, C), jnp.float32)

    # Training path (f32).
    out_train = jax.block_until_ready(drop_path_pallas(x, drop_prob, training=True, key=kd))
    ref_train = drop_path_reference(x, drop_prob, training=True, key=kd)
    ref_torch = drop_path_torch_like(x, drop_prob, training=True, key=kd)
    assert out_train.shape == x.shape and out_train.dtype == x.dtype
    assert bool(jnp.all(jnp.isfinite(out_train)))
    assert bool(jnp.allclose(out_train, ref_train, rtol=0.0, atol=0.0)), \
        "training-mode mismatch vs JAX reference"
    assert bool(jnp.allclose(out_train, ref_torch, rtol=1e-5, atol=1e-6)), \
        "training-mode mismatch vs torch-order reference"

    # Eval path: identity, short-circuited (no kernel launch, no copy).
    out_eval = drop_path_pallas(x, drop_prob, training=False)
    assert out_eval is x

    # Native-dtype (bf16) path: no f32 round-trip through HBM.
    xb = x.astype(jnp.bfloat16)
    out_bf16 = jax.block_until_ready(drop_path_pallas(xb, drop_prob, training=True, key=kd))
    ref_bf16 = drop_path_reference(xb, drop_prob, training=True, key=kd)
    assert out_bf16.dtype == jnp.bfloat16
    assert bool(jnp.allclose(out_bf16.astype(jnp.float32), ref_bf16.astype(jnp.float32),
                             rtol=1e-2, atol=1e-2)), "bf16 training-mode mismatch"

    # Fused residual path: out = res + drop_path(x).
    out_res = jax.block_until_ready(
        drop_path_pallas(x, drop_prob, training=True, key=kd, residual=res))
    ref_res = drop_path_reference(x, drop_prob, training=True, key=kd, residual=res)
    assert bool(jnp.allclose(out_res, ref_res, rtol=1e-6, atol=1e-6)), \
        "fused-residual mismatch vs JAX reference"

    print("KERNEL_OK")
</pallas_src>

<mosaic_0001>
module attributes {stable_mosaic.version = 11 : i64} {
  func.func @_drop_path_kernel(%arg0: i32, %arg1: i32, %arg2: memref<4xf32, #tpu.memory_space<smem>>, %arg3: memref<1x64x128xf32, #tpu.memory_space<vmem>>, %arg4: memref<1x64x128xf32, #tpu.memory_space<vmem>>) attributes {dimension_semantics = [#tpu.dimension_semantics<parallel>, #tpu.dimension_semantics<parallel>], iteration_bounds = array<i64: 4, 1>, scalar_prefetch = 1 : i64, scratch_operands = 0 : i64, tpu.core_type = #tpu.core_type<tc>, window_params = [{transform_indices = @transform_0, window_bounds = array<i64: 1, 64, 128>}, {transform_indices = @transform_1, window_bounds = array<i64: 1, 64, 128>}]} {
    %0 = arith.index_cast %arg0 : i32 to index
    %1 = memref.load %arg2[%0] : memref<4xf32, #tpu.memory_space<smem>>
    %c0 = arith.constant 0 : index
    %c0_0 = arith.constant 0 : index
    %c0_1 = arith.constant 0 : index
    %2 = vector.load %arg3[%c0, %c0_0, %c0_1] : memref<1x64x128xf32, #tpu.memory_space<vmem>>, vector<1x64x128xf32>
    %3 = vector.broadcast %1 : f32 to vector<1x64x128xf32>
    %4 = arith.mulf %2, %3 : vector<1x64x128xf32>
    %c0_2 = arith.constant 0 : index
    %c0_3 = arith.constant 0 : index
    %c0_4 = arith.constant 0 : index
    %5 = vector.load %arg4[%c0_2, %c0_3, %c0_4] : memref<1x64x128xf32, #tpu.memory_space<vmem>>, vector<1x64x128xf32>
    tpu.vector_store %arg4[%c0_2, %c0_3, %c0_4], %4 {strides = array<i32>} : memref<1x64x128xf32, #tpu.memory_space<vmem>>, vector<1x64x128xf32>,
    return
  }
  func.func @transform_0(%arg0: i32, %arg1: i32, %arg2: memref<4xf32, #tpu.memory_space<smem>>) -> (i32, i32, i32) {
    %c0_i32 = arith.constant 0 : i32
    %c0_i32_0 = arith.constant 0 : i32
    return %arg0, %arg1, %c0_i32 : i32, i32, i32
  }
  func.func @transform_1(%arg0: i32, %arg1: i32, %arg2: memref<4xf32, #tpu.memory_space<smem>>) -> (i32, i32, i32) {
    %c0_i32 = arith.constant 0 : i32
    %c0_i32_0 = arith.constant 0 : i32
    return %arg0, %arg1, %c0_i32 : i32, i32, i32
  }
}

</mosaic_0001>

<llo_original>
// kernel: tpu_custom_call.1
$region0: #{tpu_custom_call.1}
  #allocation0 [shape = 'u32[]', space=smem, size = 0x4, offset = 0x4, fixed_abs, tag = 'smem constant byte address 0x4 - core index']
  #allocation1 [shape = 'u32[72,128]{1,0:T(1,128)}', space=vmem, size = 0x9000, scoped, tag = 'internal scratch']
  #allocation2 [shape = 's32[1]{0}', space=sflag, size = 0x4, scoped, tag = 'scoped memory for tpu_custom_call.1']
  #allocation3 [shape = 'u8[512]{0}', space=smem, size = 0x200, scoped, tag = 'prefetched SMEM operand 0']
  %s0 = inlined_call_operand.hbm [shape: f32[4], index: 0, kind: input, shape index: {}]
  %s1 = inlined_call_operand.hbm [shape: f32[4,64,128], index: 1, kind: input, shape index: {}]
  %s2 = inlined_call_operand.hbm [shape: f32[4,64,128], index: 2, kind: output, shape index: {}]
  %s3 = sld [smem:[#allocation0]]
  $region41: #{tpu_custom_call.1} parent=0
    _
  %s5 = ssub.s32 1, %s3
  %s6 = scalar_select 0, %s5, %s3
  %s8 = sshll.u32 %s0, 4
  %s9 = int_to_ptr.hbm [resolvable:$true] %s8
  %11 = dma.hbm_to_smem %s9, 16, [#allocation3], [#allocation2]
  %13 = dma.done [#allocation2], 16
  %14 = sfence
  $region1: #{tpu_custom_call.1} parent=0
    #allocation4 [shape = 'u8[65536]{0}', space=vmem, size = 0x10000, scoped, tag = 'input window, operand 1']
    #allocation5 [shape = 's32[2]{0}', space=sflag, size = 0x8, scoped, tag = 'scoped memory for tpu_custom_call.1']
    #allocation6 [shape = 's32[2]{0}', space=sflag, size = 0x8, scoped, tag = 'scoped memory for tpu_custom_call.1']
    #allocation7 [shape = 'u8[65536]{0}', space=vmem, size = 0x10000, scoped, tag = 'output window, operand 0']
    %15 = vsyncpa [#allocation5], 0
    %s16 = scalar_lea.sflag [#allocation5], 1
    %17 = vsyncpa %s16, 0
    %18 = vsyncpa [#allocation6], 0
    %s19 = scalar_lea.sflag [#allocation6], 1
    %20 = vsyncpa %s19, 0
    loop: start=0, step=1, limit=6
    $region2: #{tpu_custom_call.1} parent=1 // loop_pre_header
      _
    $region3: #{tpu_custom_call.1} parent=1 // loop_header
      %s22 = sphi 0, %s26
      %p23 = scmp.ge.s32.totalorder %s22, 6
      %s29 = sphi 0, %s41
      %s30 = sphi 0, %s37
      %s31 = sphi 0, %s29
      %s32 = sphi 0, %s30
      %s33 = sphi 0, %s31
      %s34 = sphi 0, %s32
      %s46 = sphi 0, %s48
      %s49 = sphi 0, %s46
      %s50 = sphi 0, %s49
      %s66 = sphi 0, %s50
      %s74 = sphi 0, %s76
      %s77 = sphi 0, %s74
      %s78 = sphi 0, %s77
      %s94 = sphi 0, %s78
    $region4: #{tpu_custom_call.1} parent=1 // loop_header_branch
      %25 = sbr.rel (%p23) target = $region8
    $region5: #{tpu_custom_call.1} parent=1 // loop_body
      %s27 = ssub.s32 %s22, 1
      %s28 = ssub.s32 %s22, 2
      %s35 = sadd.s32 1, %s30
      %p36 = scmp.ge.s32.totalorder %s35, 1
      %s37 = scalar_select %p36, 0, %s35
      %s38 = sadd.s32 1, %s29
      %s39 = scalar_select %p36, %s38, %s29
      %p40 = scmp.ge.s32.totalorder %s39, 4
      %s41 = scalar_select %p40, 0, %s39
      %s42 = ssub.s32 %s29, %s41
      %s43 = ssub.s32 %s30, %s37
      %s44 = sor.u32 %s42, %s43
      %p45 = scmp.eq.s32.totalorder %s44, 0
      %s47 = sadd.s32 %s46, 1
      %s48 = scalar_select %p45, %s46, %s47
      %p51 = pneg %p45
      %p52 = scmp.eq.s32.totalorder %s22, 3
      %p53 = por %p51, %p52
      %p54 = scmp.ne.s32.totalorder %s46, %s49
      %p55 = scmp.eq.s32.totalorder %s22, 0
      %p56 = por %p54, %p55
      %p57 = scmp.ne.s32.totalorder %s46, %s49
      %p58 = scmp.eq.s32.totalorder %s27, 3
      %p59 = por %p57, %p58
      %p60 = scmp.ne.s32.totalorder %s49, %s50
      %p61 = scmp.eq.s32.totalorder %s27, 0
      %p62 = por %p60, %p61
      %p63 = scmp.ne.s32.totalorder %s49, %s50
      %p64 = scmp.eq.s32.totalorder %s28, 3
      %p65 = por %p63, %p64
      %p67 = scmp.ne.s32.totalorder %s50, %s66
      %p68 = scmp.eq.s32.totalorder %s28, 0
      %p69 = por %p67, %p68
      %s70 = ssub.s32 %s29, %s41
      %s71 = ssub.s32 %s30, %s37
      %s72 = sor.u32 %s70, %s71
      %p73 = scmp.eq.s32.totalorder %s72, 0
      %s75 = sadd.s32 %s74, 1
      %s76 = scalar_select %p73, %s74, %s75
      %p79 = pneg %p73
      %p80 = scmp.eq.s32.totalorder %s22, 3
      %p81 = por %p79, %p80
      %p82 = scmp.ne.s32.totalorder %s74, %s77
      %p83 = scmp.eq.s32.totalorder %s22, 0
      %p84 = por %p82, %p83
      %p85 = scmp.ne.s32.totalorder %s74, %s77
      %p86 = scmp.eq.s32.totalorder %s27, 3
      %p87 = por %p85, %p86
      %p88 = scmp.ne.s32.totalorder %s77, %s78
      %p89 = scmp.eq.s32.totalorder %s27, 0
      %p90 = por %p88, %p89
      %p91 = scmp.ne.s32.totalorder %s77, %s78
      %p92 = scmp.eq.s32.totalorder %s28, 3
      %p93 = por %p91, %p92
      %p95 = scmp.ne.s32.totalorder %s78, %s94
      %p96 = scmp.eq.s32.totalorder %s28, 0
      %p97 = por %p95, %p96
      %p98 = scmp.le.s32.totalorder 1, %s22
      %p99 = scmp.lt.s32.totalorder %s22, 5
      %p100 = pnand %p98, %p99
      %p101 = pneg %p100
      // Predicated region
      $region9: #{tpu_custom_call.1} parent=5 // pred_check
        _
      $region10: #{tpu_custom_call.1} parent=5 // pred_check_branch
        %103 = sbr.rel (%p100) target = $region12
      $region11: #{tpu_custom_call.1} parent=5 // pred_region
        %s104 = ssub.s32 %s22, 1
      $region12: #{tpu_custom_call.1} parent=5 // pred_fallthru
        _
      %p105 = scmp.lt.s32.totalorder %s22, 4
      // Predicated region
      $region13: #{tpu_custom_call.1} parent=5 // pred_check
        %p106 = pneg %p105
      $region14: #{tpu_custom_call.1} parent=5 // pred_check_branch
        %108 = sbr.rel (%p106) target = $region16
      $region15: #{tpu_custom_call.1} parent=5 // pred_region
        // Predicated region
        $region17: #{tpu_custom_call.1} parent=15 // pred_check
          %p109 = pneg %p56
        $region18: #{tpu_custom_call.1} parent=15 // pred_check_branch
          %111 = sbr.rel (%p109) target = $region20
        $region19: #{tpu_custom_call.1} parent=15 // pred_region
          %s112 = sand.u32 %s46, 1
          %s113 = scalar_lea.sflag [#allocation5], %s112
          %s114 = sand.u32 %s46, 1
          %s115 = smul.addr %s114, 64
          %s116 = scalar_lea.vmem [#allocation4], %s115
          %s117 = smul.u32 8, %s30
          %119 = vsyncadd %s113, 0
          %s120 = smul.addr %s29, 8
          %s121 = sadd.s32 %s117, %s120
          %s122 = smul.addr %s121, 8
          %s123 = scalar_lea.hbm %s1, %s122
          %s124 = sshll.u32 %s123, 4
          %s125 = int_to_ptr.hbm [resolvable:$true] %s124
          %s126 = sshll.u32 %s116, 4
          %s127 = int_to_ptr.vmem [resolvable:$true] %s126
          %132 = dma.hbm_to_vmem [thread:$0]  %s125, 1024, %s127, %s113, 128, 128, 8
        $region20: #{tpu_custom_call.1} parent=15 // pred_fallthru
          _
      $region16: #{tpu_custom_call.1} parent=5 // pred_fallthru
        _
      %p133 = scmp.le.s32.totalorder 1, %s22
      %p134 = scmp.lt.s32.totalorder %s22, 5
      %p135 = pnand %p133, %p134
      %p136 = pneg %p135
      // Predicated region
      $region21: #{tpu_custom_call.1} parent=5 // pred_check
        _
      $region22: #{tpu_custom_call.1} parent=5 // pred_check_branch
        %138 = sbr.rel (%p135) target = $region24
      $region23: #{tpu_custom_call.1} parent=5 // pred_region
        %s139 = ssub.s32 %s22, 1
        %s140 = sand.u32 %s49, 1
        %s141 = scalar_lea.sflag [#allocation5], %s140
        %s142 = sand.u32 %s49, 1
        %s143 = smul.addr %s142, 64
        %s144 = scalar_lea.vmem [#allocation4], %s143
        // Predicated region
        $region25: #{tpu_custom_call.1} parent=23 // pred_check
          %p145 = pneg %p62
        $region26: #{tpu_custom_call.1} parent=23 // pred_check_branch
          %147 = sbr.rel (%p145) target = $region28
        $region27: #{tpu_custom_call.1} parent=23 // pred_region
          %149 = dma.done %s141, 1024
        $region28: #{tpu_custom_call.1} parent=23 // pred_fallthru
          _
        %s150 = sand.u32 %s49, 1
        %s151 = scalar_lea.sflag [#allocation5], %s150
        %s152 = sand.u32 %s49, 1
        %s153 = smul.addr %s152, 64
        %s154 = scalar_lea.vmem [#allocation4], %s153
        %p155 = pneg %p62
        %p156 = pneg %p59
        %p157 = pneg %p90
        %p158 = pneg %p87
        %s159 = sand.u32 %s77, 1
        %s160 = scalar_lea.sflag [#allocation6], %s159
        %s161 = sand.u32 %s77, 1
        %s162 = smul.addr %s161, 64
        %s163 = scalar_lea.vmem [#allocation7], %s162
        %s164 = smul.u32 8, %s32
        %s165 = smul.u32 8, %s32
        %s166 = sld [smem:[#allocation3 + %s31]]
        %v167 = vld [vmem:[%s144] sm:$0xff]
        %v168 = vld [vmem:[%s144 + $0x8] sm:$0xff]
        %v169 = vld [vmem:[%s144 + $0x10] sm:$0xff]
        %v170 = vld [vmem:[%s144 + $0x18] sm:$0xff]
        %v171 = vld [vmem:[%s144 + $0x20] sm:$0xff]
        %v172 = vld [vmem:[%s144 + $0x28] sm:$0xff]
        %v173 = vld [vmem:[%s144 + $0x30] sm:$0xff]
        %v174 = vld [vmem:[%s144 + $0x38] sm:$0xff]
        %v175 = vstv %s166
        %v176 = vmul.f32 %v167, %v175
        %v177 = vmul.f32 %v168, %v175
        %v178 = vmul.f32 %v169, %v175
        %v179 = vmul.f32 %v170, %v175
        %v180 = vmul.f32 %v171, %v175
        %v181 = vmul.f32 %v172, %v175
        %v182 = vmul.f32 %v173, %v175
        %v183 = vmul.f32 %v174, %v175
        %184 = vst [vmem:[%s163] sm:$0xff] %v176
        %185 = vst [vmem:[%s163 + $0x8] sm:$0xff] %v177
        %186 = vst [vmem:[%s163 + $0x10] sm:$0xff] %v178
        %187 = vst [vmem:[%s163 + $0x18] sm:$0xff] %v179
        %188 = vst [vmem:[%s163 + $0x20] sm:$0xff] %v180
        %189 = vst [vmem:[%s163 + $0x28] sm:$0xff] %v181
        %190 = vst [vmem:[%s163 + $0x30] sm:$0xff] %v182
        %191 = vst [vmem:[%s163 + $0x38] sm:$0xff] %v183
        %s192 = sand.u32 %s77, 1
        %s193 = scalar_lea.sflag [#allocation6], %s192
        %s194 = sand.u32 %s77, 1
        %s195 = smul.addr %s194, 64
        %s196 = scalar_lea.vmem [#allocation7], %s195
        // Predicated region
        $region29: #{tpu_custom_call.1} parent=23 // pred_check
          %p197 = pneg %p87
        $region30: #{tpu_custom_call.1} parent=23 // pred_check_branch
          %199 = sbr.rel (%p197) target = $region32
        $region31: #{tpu_custom_call.1} parent=23 // pred_region
          %s200 = smul.u32 8, %s32
          %202 = vsyncadd %s193, 0
          %s203 = smul.addr %s31, 8
          %s204 = sadd.s32 %s200, %s203
          %s205 = smul.addr %s204, 8
          %s206 = scalar_lea.hbm %s2, %s205
          %s207 = sshll.u32 %s196, 4
          %s208 = int_to_ptr.vmem [resolvable:$true] %s207
          %s209 = sshll.u32 %s206, 4
          %s210 = int_to_ptr.hbm [resolvable:$true] %s209
          %215 = dma.vmem_to_hbm [thread:$0]  %s208, 1024, %s210, %s193, 128, 128, 8
        $region32: #{tpu_custom_call.1} parent=23 // pred_fallthru
          _
      $region24: #{tpu_custom_call.1} parent=5 // pred_fallthru
        _
      %p216 = scmp.le.s32.totalorder 2, %s22
      // Predicated region
      $region33: #{tpu_custom_call.1} parent=5 // pred_check
        %p217 = pneg %p216
      $region34: #{tpu_custom_call.1} parent=5 // pred_check_branch
        %219 = sbr.rel (%p217) target = $region36
      $region35: #{tpu_custom_call.1} parent=5 // pred_region
        %s220 = ssub.s32 %s22, 2
        // Predicated region
        $region37: #{tpu_custom_call.1} parent=35 // pred_check
          %p221 = pneg %p93
        $region38: #{tpu_custom_call.1} parent=35 // pred_check_branch
          %223 = sbr.rel (%p221) target = $region40
        $region39: #{tpu_custom_call.1} parent=35 // pred_region
          %s224 = sand.u32 %s78, 1
          %s225 = scalar_lea.sflag [#allocation6], %s224
          %s226 = sand.u32 %s78, 1
          %s227 = smul.addr %s226, 64
          %s228 = scalar_lea.vmem [#allocation7], %s227
          %230 = dma.done %s225, 1024
        $region40: #{tpu_custom_call.1} parent=35 // pred_fallthru
          _
      $region36: #{tpu_custom_call.1} parent=5 // pred_fallthru
        _
    $region6: #{tpu_custom_call.1} parent=1 // loop_footer
      %s26 = sadd.s32 1, %s22
    $region7: #{tpu_custom_call.1} parent=1 // loop_footer_branch
      %21 = sbr.rel target = $region3
    $region8: #{tpu_custom_call.1} parent=1 // loop_exit
      _
    %231 = vsyncpa [#allocation5], 1
    %s232 = scalar_lea.sflag [#allocation5], 1
    %233 = vsyncpa %s232, 1
    %234 = vsyncpa [#allocation6], 1
    %s235 = scalar_lea.sflag [#allocation6], 1
    %236 = vsyncpa %s235, 1

</llo_original>
